<compile_context>
chip_gen: v7x
topology: tpu7x:2x2x1
jax: 0.10.0
libtpu: 0.0.40
codegen_flags: <defaults>
</compile_context>

<pallas_src>
import jax
import jax.numpy as jnp
from jax.experimental import pallas as pl
from jax.experimental.pallas import tpu as pltpu

IN_FEATURES = 50
OUT_FEATURES = 10
MAX_BLOCK_B = 1024  # rows per tile; ~200 KB of f32 x per buffer at 50 features


def classifier_kernel(x_ref, w_ref, b_ref, o_ref):
    # x_ref: (TB, 50)   w_ref: (50, 10)   b_ref: (1, 10)   o_ref: (TB, 10)
    logits = (
        jnp.dot(x_ref[...], w_ref[...], preferred_element_type=jnp.float32)
        + b_ref[...]
    )

    # Numerically stable softmax over the class axis (dim=1).
    m = jnp.max(logits, axis=-1, keepdims=True)
    e = jnp.exp(logits - m)
    denom = jnp.sum(e, axis=-1, keepdims=True)
    # Exact division: memory-bound kernel, and it guarantees rows sum to 1.
    o_ref[...] = (e / denom).astype(o_ref.dtype)


def classifier_forward(x, w, b, *, block_b=MAX_BLOCK_B):
    """x: (B, 50) f32, w: (50, 10) f32, b: (10,) f32 -> (B, 10) f32."""
    B = x.shape[0]
    x = x.astype(jnp.float32)
    w = w.astype(jnp.float32)
    b2 = b.astype(jnp.float32).reshape(1, OUT_FEATURES)

    # Tile size: multiple of 8 rows, capped at block_b.
    tb = min(block_b, max(8, ((B + 7) // 8) * 8))
    # Pad batch up to a multiple of the tile size (padded rows are discarded).
    b_padded = ((B + tb - 1) // tb) * tb
    if b_padded != B:
        x = jnp.pad(x, ((0, b_padded - B), (0, 0)))

    grid = (b_padded // tb,)

    cost = pl.CostEstimate(
        flops=2 * b_padded * IN_FEATURES * OUT_FEATURES,
        transcendentals=b_padded * OUT_FEATURES,
        bytes_accessed=(
            b_padded * (IN_FEATURES + OUT_FEATURES) * 4
            + IN_FEATURES * OUT_FEATURES * 4
            + OUT_FEATURES * 4
        ),
    )

    out = pl.pallas_call(
        classifier_kernel,
        out_shape=jax.ShapeDtypeStruct((b_padded, OUT_FEATURES), jnp.float32),
        grid=grid,
        in_specs=[
            # x: tiled along the batch axis (double-buffered by Pallas).
            pl.BlockSpec((tb, IN_FEATURES), lambda i: (i, 0)),
            # w, b: resident across all batch tiles.
            pl.BlockSpec((IN_FEATURES, OUT_FEATURES), lambda i: (0, 0)),
            pl.BlockSpec((1, OUT_FEATURES), lambda i: (0, 0)),
        ],
        out_specs=pl.BlockSpec((tb, OUT_FEATURES), lambda i: (i, 0)),
        compiler_params=pltpu.CompilerParams(
            dimension_semantics=("parallel",)
        ),
        cost_estimate=cost,
    )(x, w, b2)

    return out[:B]


def reference_forward(x, w, b):
    logits = x @ w + b
    return jax.nn.softmax(logits, axis=1)


if __name__ == "__main__":
    key = jax.random.PRNGKey(0)
    kx, kw, kb = jax.random.split(key, 3)

    B = 10  # small batch; not a multiple of 8 to exercise the padded tail path
    # Deterministic parameter init (matches nn.Linear's U(-1/sqrt(50), 1/sqrt(50)))
    bound = 1.0 / jnp.sqrt(jnp.float32(IN_FEATURES))
    w = jax.random.uniform(kw, (IN_FEATURES, OUT_FEATURES), jnp.float32,
                           minval=-bound, maxval=bound)
    b = jax.random.uniform(kb, (OUT_FEATURES,), jnp.float32,
                           minval=-bound, maxval=bound)
    x = jax.random.normal(kx, (B, IN_FEATURES), jnp.float32)

    out = classifier_forward(x, w, b)
    out = jax.block_until_ready(out)

    ref = reference_forward(x, w, b)
    assert out.shape == (B, OUT_FEATURES)
    assert jnp.allclose(out, ref, atol=1e-5, rtol=1e-5)
    # softmax rows sum to ~1 (exact division in-kernel)
    assert jnp.allclose(jnp.sum(out, axis=1), jnp.ones((B,)), atol=1e-5)

    print("KERNEL_OK")
</pallas_src>

<mosaic_0001>
module attributes {stable_mosaic.version = 11 : i64} {
  func.func @classifier_kernel(%arg0: i32, %arg1: memref<16x50xf32, #tpu.memory_space<vmem>>, %arg2: memref<50x10xf32, #tpu.memory_space<vmem>>, %arg3: memref<1x10xf32, #tpu.memory_space<vmem>>, %arg4: memref<16x10xf32, #tpu.memory_space<vmem>>) attributes {dimension_semantics = [#tpu.dimension_semantics<parallel>], iteration_bounds = array<i64: 1>, scalar_prefetch = 0 : i64, scratch_operands = 0 : i64, tpu.core_type = #tpu.core_type<tc>, window_params = [{transform_indices = @transform_0, window_bounds = array<i64: 16, 50>}, {pipeline_mode = #tpu.pipeline_mode<synchronous>, transform_indices = @transform_1, window_bounds = array<i64: 50, 10>}, {pipeline_mode = #tpu.pipeline_mode<synchronous>, transform_indices = @transform_2, window_bounds = array<i64: 1, 10>}, {transform_indices = @transform_3, window_bounds = array<i64: 16, 10>}]} {
    %c0 = arith.constant 0 : index
    %c0_0 = arith.constant 0 : index
    %0 = vector.load %arg1[%c0, %c0_0] : memref<16x50xf32, #tpu.memory_space<vmem>>, vector<16x50xf32>
    %c0_1 = arith.constant 0 : index
    %c0_2 = arith.constant 0 : index
    %1 = vector.load %arg2[%c0_1, %c0_2] : memref<50x10xf32, #tpu.memory_space<vmem>>, vector<50x10xf32>
    %cst = arith.constant dense<0.000000e+00> : vector<16x10xf32>
    %2 = tpu.matmul %0, %1, %cst {dimension_numbers = #tpu.dot_dimension_numbers<[1], [0], [0], [1], [0, 0, 1, 1], [], []>} : vector<16x50xf32>, vector<50x10xf32>, vector<16x10xf32> -> vector<16x10xf32>
    %c0_3 = arith.constant 0 : index
    %c0_4 = arith.constant 0 : index
    %3 = vector.load %arg3[%c0_3, %c0_4] : memref<1x10xf32, #tpu.memory_space<vmem>>, vector<1x10xf32>
    %4 = vector.broadcast %3 : vector<1x10xf32> to vector<16x10xf32>
    %5 = arith.addf %2, %4 : vector<16x10xf32>
    %cst_5 = arith.constant dense<0xFF800000> : vector<16xf32>
    %6 = vector.multi_reduction <maximumf>, %5, %cst_5 [1] : vector<16x10xf32> to vector<16xf32>
    %7 = vector.shape_cast %6 : vector<16xf32> to vector<16x1xf32>
    %8 = vector.broadcast %7 : vector<16x1xf32> to vector<16x10xf32>
    %9 = arith.subf %5, %8 : vector<16x10xf32>
    %10 = math.exp %9 : vector<16x10xf32>
    %cst_6 = arith.constant dense<0.000000e+00> : vector<16xf32>
    %11 = vector.multi_reduction <add>, %10, %cst_6 [1] : vector<16x10xf32> to vector<16xf32>
    %12 = vector.shape_cast %11 : vector<16xf32> to vector<16x1xf32>
    %13 = vector.broadcast %12 : vector<16x1xf32> to vector<16x10xf32>
    %14 = arith.divf %10, %13 : vector<16x10xf32>
    %c0_7 = arith.constant 0 : index
    %c0_8 = arith.constant 0 : index
    %15 = vector.load %arg4[%c0_7, %c0_8] : memref<16x10xf32, #tpu.memory_space<vmem>>, vector<16x10xf32>
    tpu.vector_store %arg4[%c0_7, %c0_8], %14 {strides = array<i32>} : memref<16x10xf32, #tpu.memory_space<vmem>>, vector<16x10xf32>,
    return
  }
  func.func @transform_0(%arg0: i32) -> (i32, i32) {
    %c0_i32 = arith.constant 0 : i32
    %c0_i32_0 = arith.constant 0 : i32
    return %arg0, %c0_i32 : i32, i32
  }
  func.func @transform_1(%arg0: i32) -> (i32, i32) {
    %c0_i32 = arith.constant 0 : i32
    %c0_i32_0 = arith.constant 0 : i32
    %c0_i32_1 = arith.constant 0 : i32
    return %c0_i32, %c0_i32_0 : i32, i32
  }
  func.func @transform_2(%arg0: i32) -> (i32, i32) {
    %c0_i32 = arith.constant 0 : i32
    %c0_i32_0 = arith.constant 0 : i32
    %c0_i32_1 = arith.constant 0 : i32
    return %c0_i32, %c0_i32_0 : i32, i32
  }
  func.func @transform_3(%arg0: i32) -> (i32, i32) {
    %c0_i32 = arith.constant 0 : i32
    %c0_i32_0 = arith.constant 0 : i32
    return %arg0, %c0_i32 : i32, i32
  }
}

</mosaic_0001>

<llo_original>
// kernel: tpu_custom_call.1
$region0: #{tpu_custom_call.1}
  #allocation0 [shape = 'u32[]', space=smem, size = 0x4, offset = 0x4, fixed_abs, tag = 'smem constant byte address 0x4 - core index']
  #allocation1 [shape = 'u32[144,128]{1,0:T(1,128)}', space=vmem, size = 0x12000, scoped, tag = 'internal scratch']
  %s0 = inlined_call_operand.vmem [shape: f32[16,50], index: 0, kind: input, shape index: {}]
  %s1 = inlined_call_operand.vmem [shape: f32[50,10], index: 1, kind: input, shape index: {}]
  %s2 = inlined_call_operand.vmem [shape: f32[1,10], index: 2, kind: input, shape index: {}]
  %s3 = inlined_call_operand.hbm [shape: f32[16,10], index: 3, kind: output, shape index: {}]
  %s4 = sld [smem:[#allocation0]]
  $region22: #{tpu_custom_call.1} parent=0
    _
  %s6 = ssub.s32 1, %s4
  %s7 = scalar_select 0, %s6, %s4
  $region1: #{tpu_custom_call.1} parent=0
    #allocation2 [shape = 'u8[8192]{0}', space=vmem, size = 0x2000, scoped, tag = 'output window, operand 0, single buffered']
    #allocation3 [shape = 's32[1]{0}', space=sflag, size = 0x4, scoped, tag = 'scoped memory for tpu_custom_call.1']
    %8 = vsyncpa [#allocation3], 0
    // Predicated region
    $region2: #{tpu_custom_call.1} parent=1 // pred_check
      _
    $region3: #{tpu_custom_call.1} parent=1 // pred_check_branch
      %10 = sbr.rel (0) target = $region5
    $region4: #{tpu_custom_call.1} parent=1 // pred_region
      _
    $region5: #{tpu_custom_call.1} parent=1 // pred_fallthru
      _
    // Predicated region
    $region6: #{tpu_custom_call.1} parent=1 // pred_check
      _
    $region7: #{tpu_custom_call.1} parent=1 // pred_check_branch
      %12 = sbr.rel (0) target = $region9
    $region8: #{tpu_custom_call.1} parent=1 // pred_region
      _
    $region9: #{tpu_custom_call.1} parent=1 // pred_fallthru
      _
    // Predicated region
    $region10: #{tpu_custom_call.1} parent=1 // pred_check
      _
    $region11: #{tpu_custom_call.1} parent=1 // pred_check_branch
      %14 = sbr.rel (0) target = $region13
    $region12: #{tpu_custom_call.1} parent=1 // pred_region
      _
    $region13: #{tpu_custom_call.1} parent=1 // pred_fallthru
      _
    %v15 = vld [vmem:[%s0] sm:$0xff]
    %v16 = vld [vmem:[%s0 + $0x8] sm:$0xff]
    %v17 = vld [vmem:[%s1] sm:$0xff]
    %v18 = vld [vmem:[%s1 + $0x8] sm:$0xff]
    %v19 = vld [vmem:[%s1 + $0x10] sm:$0xff]
    %v20 = vld [vmem:[%s1 + $0x18] sm:$0xff]
    %v21 = vld [vmem:[%s1 + $0x20] sm:$0xff]
    %v22 = vld [vmem:[%s1 + $0x28] sm:$0xff]
    %v23 = vld [vmem:[%s1 + $0x30] sm:$0x3]
    %v24 = vld [vmem:[%s2] sm:$0x1]
    %v26 = vlaneseq
    %v27 = vshrl.u32 %v26, 7
    %v28 = vsub.s32 0, %v27
    %v29 = vrot.slane %v24, %v28
    %vm31 = vcmask 408576
    %v33 = vsel %vm31, %v15, 0
    %v36 = vsel %vm31, %v16, 0
    %vm38 = vcmask 1041408
    %v40 = vsel %vm38, %v23, 0
    %42 = vmatprep.subr.mxu0 0.0
    %43 = vmatpush1.msra.mxu0 %v17
    %44 = vmatprep.subr.mxu0 0.0
    %45 = vmatpush1.msra.mxu0 %v18
    %46 = vmatprep.subr.mxu0 0.0
    %47 = vmatpush1.msra.mxu0 %v19
    %48 = vmatprep.subr.mxu0 0.0
    %49 = vmatpush1.msra.mxu0 %v20
    %50 = vmatprep.subr.mxu0 0.0
    %51 = vmatpush1.msra.mxu0 %v21
    %52 = vmatprep.subr.mxu0 0.0
    %53 = vmatpush1.msra.mxu0 %v22
    %54 = vmatprep.subr.mxu0 0.0
    %55 = vmatpush1.msra.mxu0 %v40
    %56 = vmatprep.subr.mxu0 0.0
    %57 = vmatpush1.msra.mxu0 0.0
    %58 = vmatprep.subr.mxu0 0.0
    %59 = vmatpush1.msra.mxu0 0.0
    %60 = vmatprep.subr.mxu0 0.0
    %61 = vmatpush1.msra.mxu0 0.0
    %62 = vmatprep.subr.mxu0 0.0
    %63 = vmatpush1.msra.mxu0 0.0
    %64 = vmatprep.subr.mxu0 0.0
    %65 = vmatpush1.msra.mxu0 0.0
    %66 = vmatprep.subr.mxu0 0.0
    %67 = vmatpush1.msra.mxu0 0.0
    %68 = vmatprep.subr.mxu0 0.0
    %69 = vmatpush1.msra.mxu0 0.0
    %70 = vmatprep.subr.mxu0 0.0
    %71 = vmatpush1.msra.mxu0 0.0
    %72 = vmatprep.subr.mxu0 0.0
    %73 = vmatpush1.msra.mxu0 0.0
    %74 = vmatprep.subr.mxu0 0.0
    %75 = vmatpush1.msra.mxu0 0.0
    %76 = vmatprep.subr.mxu0 0.0
    %77 = vmatpush1.msra.mxu0 0.0
    %78 = vmatprep.subr.mxu0 0.0
    %79 = vmatpush1.msra.mxu0 0.0
    %80 = vmatprep.subr.mxu0 0.0
    %81 = vmatpush1.msra.mxu0 0.0
    %82 = vmatprep.subr.mxu0 0.0
    %83 = vmatpush1.msra.mxu0 0.0
    %84 = vmatprep.subr.mxu0 0.0
    %85 = vmatpush1.msra.mxu0 0.0
    %86 = vmatprep.subr.mxu0 0.0
    %87 = vmatpush1.msra.mxu0 0.0
    %88 = vmatprep.subr.mxu0 0.0
    %89 = vmatpush1.msra.mxu0 0.0
    %90 = vmatprep.subr.mxu0 0.0
    %91 = vmatpush1.msra.mxu0 0.0
    %92 = vmatprep.subr.mxu0 0.0
    %93 = vmatpush1.msra.mxu0 0.0
    %94 = vmatprep.subr.mxu0 0.0
    %95 = vmatpush1.msra.mxu0 0.0
    %96 = vmatprep.subr.mxu0 0.0
    %97 = vmatpush1.msra.mxu0 0.0
    %98 = vmatprep.subr.mxu0 0.0
    %99 = vmatpush1.msra.mxu0 0.0
    %100 = vmatprep.subr.mxu0 0.0
    %101 = vmatpush1.msra.mxu0 0.0
    %102 = vmatprep.subr.mxu0 0.0
    %103 = vmatpush1.msra.mxu0 0.0
    %104 = vmatprep.subr.mxu0 0.0
    %105 = vmatpush1.msra.mxu0 0.0
    %106 = vmatprep.mubr.f32.mxu0 0.0
    %107 = vmatmul.mubr.f32.gmra.mrb[0].mxu0 %v33
    %v108 = vpop.f32.mrb[0].mxu0
    %v109 = vadd.f32 %v29, %v108
    %v110 = vpop.f32.mrb[0].mxu0
    %111 = vmatprep.mubr.f32.mxu0 0.0
    %112 = vmatmul.mubr.f32.gmra.mrb[0].mxu0 %v36
    %v113 = vpop.f32.mrb[0].mxu0
    %v114 = vadd.f32 %v29, %v113
    %v115 = vpop.f32.mrb[0].mxu0
    %116 = vdwg.mxu0
    %vm117 = vcmask 80896
    %v118 = vsel %vm117, %v109, -inf
    %119 = vmax.xlane.f32.xlu0 %v118
    %v120 = vpop.xlane.xlu0 %119
    %v121 = vsel %vm117, %v114, -inf
    %122 = vmax.xlane.f32.xlu0 %v121
    %v123 = vpop.xlane.xlu0 %122
    %v124 = vsub.f32 %v109, %v120
    %v125 = vsub.f32 %v114, %v123
    %v126 = vmul.f32 %v124, 1.442695
    %v127 = vpow.pop %v126
    %v128 = vmul.f32 %v125, 1.442695
    %v129 = vpow.pop %v128
    %v130 = vsel %vm117, %v127, 0.0
    %131 = vadd.xlane.f32.xlu0 %v130
    %v132 = vpop.xlane.xlu0 %131
    %v133 = vsel %vm117, %v129, 0.0
    %134 = vadd.xlane.f32.xlu0 %v133
    %v135 = vpop.xlane.xlu0 %134
    %v136 = vrcp.pop %v132
    %v137 = vmul.f32 %v127, %v136
    %v138 = vrcp.pop %v135
    %v139 = vmul.f32 %v129, %v138
    %140 = vst.msk [vmem:[#allocation2] sm:$0xff] %vm117, %v137
    %141 = vst.msk [vmem:[#allocation2 + $0x8] sm:$0xff] %vm117, %v139
    // Predicated region
    $region14: #{tpu_custom_call.1} parent=1 // pred_check
      _
    $region15: #{tpu_custom_call.1} parent=1 // pred_check_branch
      %143 = sbr.rel (0) target = $region17
    $region16: #{tpu_custom_call.1} parent=1 // pred_region
      %s145 = ssub.s32 256, 256
      %146 = vsyncadd [#allocation3], %s145
      %s147 = sshll.u32 [#allocation2], 4
      %s148 = int_to_ptr.vmem [resolvable:$true] %s147
      %153 = dma.vmem_to_hbm [thread:$0]  %s148, 256, %s3, [#allocation3], 128, 128, 8
    $region17: #{tpu_custom_call.1} parent=1 // pred_fallthru
      _
    // Predicated region
    $region18: #{tpu_custom_call.1} parent=1 // pred_check
      _
    $region19: #{tpu_custom_call.1} parent=1 // pred_check_branch
      %155 = sbr.rel (0) target = $region21
    $region20: #{tpu_custom_call.1} parent=1 // pred_region
      %156 = dma.done [#allocation3], 256
    $region21: #{tpu_custom_call.1} parent=1 // pred_fallthru
      _
    %157 = vsyncpa [#allocation3], 1

</llo_original>
